<compile_context>
chip_gen: v7x
topology: tpu7x:2x2x1
jax: 0.10.0
libtpu: 0.0.40
codegen_flags: <defaults>
</compile_context>

<pallas_src>
import functools

import jax
import jax.numpy as jnp
import numpy as np
from jax import lax
from jax.experimental import pallas as pl
from jax.experimental.pallas import tpu as pltpu

_LANES = 128


def _round_up(x: int, m: int) -> int:
    return (x + m - 1) // m * m


def _gather_logp_kernel(inp_ref, tgt_ref, out_ref, acc_ref, *, n_rows):
    """One (row-tile, col-tile) step of the per-row log-prob gather.

    inp_ref : (TILE_N, TILE_C) log-probs (f32 or bf16), unpadded array + cdiv grid
    tgt_ref : (TILE_N, 1)      int32 class ids (global column index)
    out_ref : (TILE_N, 1)      f32 gathered x[n, target[n]]
    acc_ref : (TILE_N, 128)    f32 lane-dense VMEM accumulator (scratch)
    """
    i = pl.program_id(0)
    j = pl.program_id(1)
    tile_n, tile_c = inp_ref.shape

    # Accumulator lives in VMEM scratch across the column ("arbitrary") axis.
    @pl.when(j == 0)
    def _init():
        acc_ref[...] = jnp.zeros_like(acc_ref)

    # Row validity for the ragged last row tile: garbage targets in rows >= N
    # must never match any column.  (Ragged columns need no extra mask: valid
    # targets are < C so they never select the column tail.)
    row = lax.broadcasted_iota(jnp.int32, (tile_n, 1), 0) + i * tile_n
    tgt = jnp.where(row < n_rows, tgt_ref[...], -1)            # (TILE_N, 1)

    lane = lax.broadcasted_iota(jnp.int32, (1, _LANES), 1)     # (1, 128)

    # Process the tile 128 lanes at a time: fused select + lane-dense add.
    # Static lane-aligned slices -> pure VPU work, no relayout, small temps.
    def chunk(k):
        off = j * tile_c + k * _LANES                          # global col base
        xk = inp_ref[:, k * _LANES:(k + 1) * _LANES].astype(jnp.float32)
        return jnp.where(lane + off == tgt, xk, 0.0)           # (TILE_N, 128)

    folded = chunk(0)
    for k in range(1, tile_c // _LANES):
        folded = folded + chunk(k)
    acc_ref[...] += folded

    # Deferred cross-lane (XLU) reduction + narrow store: last column step only.
    @pl.when(j == pl.num_programs(1) - 1)
    def _finalize():
        out_ref[...] = jnp.sum(acc_ref[...], axis=1, keepdims=True)


def neg_nll_loss(inp, target, weight, *, tile_n=512, tile_c=2048):
    """Weighted NLL loss matching F.nll_loss(input, target, weight=weight).

    inp    : (N, C) log-probabilities (f32 or bf16)
    target : (N,)   int class ids, 0 <= target < C (assumed)
    weight : (C,) or (C, 1) per-class weights
    """
    N, C = inp.shape
    itemsize = jnp.dtype(inp.dtype).itemsize
    sub = 16 if jnp.dtype(inp.dtype) == jnp.bfloat16 else 8   # sublane packing

    # Row tile: clamp to the (sublane-rounded) batch, keep sublane-aligned.
    tile_n = int(min(tile_n, _round_up(N, sub)))
    tile_n = _round_up(tile_n, sub)
    # v7x megacore: ensure >= 2 row tiles whenever N allows it so the "parallel"
    # axis actually shards across both TensorCores.
    if N > 2 * sub and pl.cdiv(N, tile_n) < 2:
        tile_n = _round_up(pl.cdiv(N, 2), sub)
    # Column tile: lane-aligned, clamped to the (lane-rounded) class count.
    tile_c = int(min(tile_c, _round_up(C, _LANES)))
    tile_c = _round_up(tile_c, _LANES)
    assert tile_n % sub == 0 and tile_c % _LANES == 0, (tile_n, tile_c)

    # Explicit VMEM budget: 2x double-buffered input block + per-chunk f32
    # temporaries + lane-dense accumulator + targets/outputs.  Must fit the
    # scoped limit on every generation (v7x has only 64 MiB physical VMEM).
    vmem_limit = 32 * 1024 * 1024
    vmem_budget = (2 * tile_n * tile_c * itemsize      # double-buffered input
                   + 3 * tile_n * _LANES * 4           # chunk temps + accumulator
                   + 4 * tile_n * 4)                   # targets + output (+slack)
    assert vmem_budget <= vmem_limit, (vmem_budget, vmem_limit)

    grid = (pl.cdiv(N, tile_n), pl.cdiv(C, tile_c))

    tgt_2d = target.reshape(N, 1).astype(jnp.int32)

    cost = pl.CostEstimate(
        flops=3 * N * C,                               # compare + select + add
        transcendentals=0,
        bytes_accessed=N * C * itemsize + N * 4 + N * 4,
    )

    x_t = pl.pallas_call(
        functools.partial(_gather_logp_kernel, n_rows=N),
        out_shape=jax.ShapeDtypeStruct((N, 1), jnp.float32),
        grid=grid,
        in_specs=[
            pl.BlockSpec((tile_n, tile_c), lambda i, j: (i, j)),
            pl.BlockSpec((tile_n, 1), lambda i, j: (i, 0)),
        ],
        out_specs=pl.BlockSpec((tile_n, 1), lambda i, j: (i, 0)),
        scratch_shapes=[pltpu.VMEM((tile_n, _LANES), jnp.float32)],
        compiler_params=pltpu.CompilerParams(
            dimension_semantics=("parallel", "arbitrary"),
            vmem_limit_bytes=vmem_limit,
        ),
        cost_estimate=cost,
    )(inp, tgt_2d)

    x_t = x_t.reshape(N)
    # weight[target] is a tiny N-element gather -> plain XLA in the wrapper.
    w_t = jnp.take(weight.reshape(-1).astype(jnp.float32), target.astype(jnp.int32))
    # F.nll_loss(..., weight, reduction='mean') = -(sum w_t * x_t) / (sum w_t)
    return -jnp.sum(w_t * x_t) / jnp.sum(w_t)


def make_distr(ix_to_word, word_freqs):
    # distr = F.normalize(freqs ** 0.75, dim=0)  -> L2 normalization (p=2)
    freqs = jnp.array(
        [word_freqs[ix_to_word[i]] for i in range(len(word_freqs))], dtype=jnp.float32
    )
    p = freqs ** 0.75
    return p / jnp.sqrt(jnp.sum(p ** 2))


def sample_weights(distr, positives, num_samples, num_words, rng):
    """Replicates NEGLoss.sample: +1 for each positive, plus `num_samples`
    rejection-sampled negatives (drawn ~ distr, re-drawn while == positive)."""
    # TODO(synk): sequential torch.multinomial rejection sampling has no clean
    # Pallas equivalent; kept as deterministic host-side numpy glue.
    weights = np.zeros((num_words,), dtype=np.float32)
    p = np.asarray(distr, dtype=np.float64)
    p = p / p.sum()  # torch.multinomial normalizes internally
    for w in positives:
        weights[int(w)] += 1.0
    for positive_label in positives:
        for _ in range(int(num_samples)):
            w = int(rng.choice(num_words, p=p))
            while w == int(positive_label):
                w = int(rng.choice(num_words, p=p))
            weights[w] += 1.0
    return weights


if __name__ == "__main__":
    # Small deterministic setup consistent with the module's forward:
    # input (N, C) log-probs, target (N,) class ids, C = num_words.
    # Unaligned shapes on purpose so the ragged-edge (no-padding) paths run.
    num_words = 250     # C
    N = 13              # batch
    num_negative_samples = 5

    ix_to_word = {i: f"w{i}" for i in range(num_words)}
    word_freqs = {f"w{i}": float((i % 17) + 1) for i in range(num_words)}
    distr = make_distr(ix_to_word, word_freqs)

    key = jax.random.PRNGKey(0)
    k1, k2 = jax.random.split(key)
    logits = jax.random.normal(k1, (N, num_words), dtype=jnp.float32)
    inp = jax.nn.log_softmax(logits, axis=-1)  # nll_loss expects log-probs
    target = jax.random.randint(k2, (N,), 0, num_words, dtype=jnp.int32)

    # forward(): weight = sample(num_negative_samples, positives=target)
    rng = np.random.default_rng(0)  # deterministic; torch RNG not reproducible
    w_np = sample_weights(np.asarray(distr), np.asarray(target),
                          num_negative_samples, num_words, rng)
    weight = jnp.asarray(w_np)

    # Pure-numpy reference of weighted nll_loss for a correctness check.
    tgt_np = np.asarray(target)
    inp_np = np.asarray(inp)
    wsel = w_np[tgt_np]
    ref = -(wsel * inp_np[np.arange(N), tgt_np]).sum() / wsel.sum()

    # (a) small tiles -> a real (2, 2) grid with ragged row and column edges.
    loss_small = jax.block_until_ready(
        neg_nll_loss(inp, target, weight, tile_n=8, tile_c=128))
    assert np.allclose(float(loss_small), ref, rtol=1e-5, atol=1e-5), (
        float(loss_small), ref)

    # (b) default (large) tiles -> single over-sized block, still ragged.
    loss_default = jax.block_until_ready(neg_nll_loss(inp, target, weight))
    assert np.allclose(float(loss_default), ref, rtol=1e-5, atol=1e-5), (
        float(loss_default), ref)

    print("KERNEL_OK")
</pallas_src>

<mosaic_0001>
module attributes {stable_mosaic.version = 11 : i64} {
  func.func @_gather_logp_kernel(%arg0: i32, %arg1: i32, %arg2: memref<8x128xf32, #tpu.memory_space<vmem>>, %arg3: memref<8x1xi32, #tpu.memory_space<vmem>>, %arg4: memref<8x1xf32, #tpu.memory_space<vmem>>, %arg5: memref<8x128xf32, #tpu.memory_space<vmem>>) attributes {dimension_semantics = [#tpu.dimension_semantics<parallel>, #tpu.dimension_semantics<arbitrary>], iteration_bounds = array<i64: 2, 2>, scalar_prefetch = 0 : i64, scratch_operands = 1 : i64, tpu.core_type = #tpu.core_type<tc>, window_params = [{transform_indices = @transform_0, window_bounds = array<i64: 8, 128>}, {transform_indices = @transform_1, window_bounds = array<i64: 8, 1>}, {transform_indices = @transform_2, window_bounds = array<i64: 8, 1>}]} {
    %c0_i32 = arith.constant 0 : i32
    %0 = arith.cmpi eq, %arg1, %c0_i32 : i32
    %1 = arith.extui %0 : i1 to i32
    %c0_i32_0 = arith.constant 0 : i32
    %2 = arith.cmpi ne, %1, %c0_i32_0 : i32
    scf.if %2 {
      %cst_10 = arith.constant 0.000000e+00 : f32
      %29 = vector.broadcast %cst_10 : f32 to vector<8x128xf32>
      %c0_11 = arith.constant 0 : index
      %c0_12 = arith.constant 0 : index
      %30 = vector.load %arg5[%c0_11, %c0_12] : memref<8x128xf32, #tpu.memory_space<vmem>>, vector<8x128xf32>
      tpu.vector_store %arg5[%c0_11, %c0_12], %29 {strides = array<i32>} : memref<8x128xf32, #tpu.memory_space<vmem>>, vector<8x128xf32>,
    } else {
    }
    %3 = tpu.iota {dimensions = array<i32: 0>} : vector<8x1xi32>
    %c8_i32 = arith.constant 8 : i32
    %4 = arith.muli %arg0, %c8_i32 : i32
    %5 = vector.broadcast %4 : i32 to vector<8x1xi32>
    %6 = arith.addi %3, %5 : vector<8x1xi32>
    %c13_i32 = arith.constant 13 : i32
    %7 = vector.broadcast %c13_i32 : i32 to vector<8x1xi32>
    %8 = arith.cmpi slt, %6, %7 : vector<8x1xi32>
    %c0 = arith.constant 0 : index
    %c0_1 = arith.constant 0 : index
    %9 = vector.load %arg3[%c0, %c0_1] : memref<8x1xi32, #tpu.memory_space<vmem>>, vector<8x1xi32>
    %c-1_i32 = arith.constant -1 : i32
    %10 = vector.broadcast %c-1_i32 : i32 to vector<8x1xi32>
    %11 = arith.select %8, %9, %10 : vector<8x1xi1>, vector<8x1xi32>
    %12 = tpu.iota {dimensions = array<i32: 1>} : vector<1x128xi32>
    %c128_i32 = arith.constant 128 : i32
    %13 = arith.muli %arg1, %c128_i32 : i32
    %c0_i32_2 = arith.constant 0 : i32
    %14 = arith.addi %13, %c0_i32_2 : i32
    %c0_3 = arith.constant 0 : index
    %c0_4 = arith.constant 0 : index
    %15 = vector.load %arg2[%c0_3, %c0_4] : memref<8x128xf32, #tpu.memory_space<vmem>>, vector<8x128xf32>
    %16 = vector.broadcast %14 : i32 to vector<1x128xi32>
    %17 = arith.addi %12, %16 : vector<1x128xi32>
    %18 = vector.broadcast %17 : vector<1x128xi32> to vector<8x128xi32>
    %19 = vector.broadcast %11 : vector<8x1xi32> to vector<8x128xi32>
    %20 = arith.cmpi eq, %18, %19 : vector<8x128xi32>
    %cst = arith.constant 0.000000e+00 : f32
    %21 = vector.broadcast %cst : f32 to vector<8x128xf32>
    %22 = arith.select %20, %15, %21 : vector<8x128xi1>, vector<8x128xf32>
    %c0_5 = arith.constant 0 : index
    %c0_6 = arith.constant 0 : index
    %23 = vector.load %arg5[%c0_5, %c0_6] : memref<8x128xf32, #tpu.memory_space<vmem>>, vector<8x128xf32>
    %24 = arith.addf %23, %22 : vector<8x128xf32>
    %c0_7 = arith.constant 0 : index
    %c0_8 = arith.constant 0 : index
    %25 = vector.load %arg5[%c0_7, %c0_8] : memref<8x128xf32, #tpu.memory_space<vmem>>, vector<8x128xf32>
    tpu.vector_store %arg5[%c0_7, %c0_8], %24 {strides = array<i32>} : memref<8x128xf32, #tpu.memory_space<vmem>>, vector<8x128xf32>,
    %c1_i32 = arith.constant 1 : i32
    %26 = arith.cmpi eq, %arg1, %c1_i32 : i32
    %27 = arith.extui %26 : i1 to i32
    %c0_i32_9 = arith.constant 0 : i32
    %28 = arith.cmpi ne, %27, %c0_i32_9 : i32
    scf.if %28 {
      %c0_10 = arith.constant 0 : index
      %c0_11 = arith.constant 0 : index
      %29 = vector.load %arg5[%c0_10, %c0_11] : memref<8x128xf32, #tpu.memory_space<vmem>>, vector<8x128xf32>
      %cst_12 = arith.constant dense<0.000000e+00> : vector<8xf32>
      %30 = vector.multi_reduction <add>, %29, %cst_12 [1] : vector<8x128xf32> to vector<8xf32>
      %31 = vector.shape_cast %30 : vector<8xf32> to vector<8x1xf32>
      %c0_13 = arith.constant 0 : index
      %c0_14 = arith.constant 0 : index
      %32 = vector.load %arg4[%c0_13, %c0_14] : memref<8x1xf32, #tpu.memory_space<vmem>>, vector<8x1xf32>
      tpu.vector_store %arg4[%c0_13, %c0_14], %31 {strides = array<i32>} : memref<8x1xf32, #tpu.memory_space<vmem>>, vector<8x1xf32>,
    } else {
    }
    return
  }
  func.func @transform_0(%arg0: i32, %arg1: i32) -> (i32, i32) {
    %c0_i32 = arith.constant 0 : i32
    return %arg0, %arg1 : i32, i32
  }
  func.func @transform_1(%arg0: i32, %arg1: i32) -> (i32, i32) {
    %c0_i32 = arith.constant 0 : i32
    %c0_i32_0 = arith.constant 0 : i32
    return %arg0, %c0_i32 : i32, i32
  }
  func.func @transform_2(%arg0: i32, %arg1: i32) -> (i32, i32) {
    %c0_i32 = arith.constant 0 : i32
    %c0_i32_0 = arith.constant 0 : i32
    return %arg0, %c0_i32 : i32, i32
  }
}

</mosaic_0001>

<llo_original>
// kernel: tpu_custom_call.1
$region0: #{tpu_custom_call.1}
  #allocation0 [shape = 'u32[]', space=smem, size = 0x4, offset = 0x4, fixed_abs, tag = 'smem constant byte address 0x4 - core index']
  #allocation1 [shape = 'u32[144,128]{1,0:T(1,128)}', space=vmem, size = 0x12000, scoped, tag = 'internal scratch']
  #allocation2 [shape = 'f32[8,128]{1,0:T(8,128)}', space=vmem, size = 0x1000, scoped, tag = 'scratch operand']
  %s0 = inlined_call_operand.hbm [shape: f32[13,250], index: 0, kind: input, shape index: {}]
  %s1 = inlined_call_operand.vmem [shape: s32[13,1], index: 1, kind: input, shape index: {}]
  %s2 = inlined_call_operand.vmem [shape: f32[13,1], index: 2, kind: output, shape index: {}]
  %s3 = sld [smem:[#allocation0]]
  $region53: #{tpu_custom_call.1} parent=0
    _
  %s5 = ssub.s32 1, %s3
  %s6 = scalar_select 0, %s5, %s3
  $region1: #{tpu_custom_call.1} parent=0
    #allocation3 [shape = 'u8[8192]{0}', space=vmem, size = 0x2000, scoped, tag = 'input window, operand 0']
    #allocation4 [shape = 's32[2]{0}', space=sflag, size = 0x8, scoped, tag = 'scoped memory for tpu_custom_call.1']
    %7 = vsyncpa [#allocation4], 0
    %s8 = scalar_lea.sflag [#allocation4], 1
    %9 = vsyncpa %s8, 0
    loop: start=0, step=1, limit=6
    $region2: #{tpu_custom_call.1} parent=1 // loop_pre_header
      _
    $region3: #{tpu_custom_call.1} parent=1 // loop_header
      %s11 = sphi 0, %s15
      %p12 = scmp.ge.s32.totalorder %s11, 6
      %s18 = sphi 0, %s30
      %s19 = sphi 0, %s26
      %s20 = sphi 0, %s18
      %s21 = sphi 0, %s19
      %s22 = sphi 0, %s20
      %s23 = sphi 0, %s21
      %s35 = sphi 0, %s37
      %s38 = sphi 0, %s35
      %s39 = sphi 0, %s38
      %s55 = sphi 0, %s39
      %s61 = sphi 0, %s63
      %s64 = sphi 0, %s61
      %s65 = sphi 0, %s64
      %s81 = sphi 0, %s65
      %s87 = sphi 0, %s89
      %s90 = sphi 0, %s87
      %s91 = sphi 0, %s90
      %s107 = sphi 0, %s91
    $region4: #{tpu_custom_call.1} parent=1 // loop_header_branch
      %14 = sbr.rel (%p12) target = $region8
    $region5: #{tpu_custom_call.1} parent=1 // loop_body
      %s16 = ssub.s32 %s11, 1
      %s17 = ssub.s32 %s11, 2
      %s24 = sadd.s32 1, %s19
      %p25 = scmp.ge.s32.totalorder %s24, 2
      %s26 = scalar_select %p25, 0, %s24
      %s27 = sadd.s32 1, %s18
      %s28 = scalar_select %p25, %s27, %s18
      %p29 = scmp.ge.s32.totalorder %s28, 2
      %s30 = scalar_select %p29, 0, %s28
      %s31 = ssub.s32 %s18, %s30
      %s32 = ssub.s32 %s19, %s26
      %s33 = sor.u32 %s31, %s32
      %p34 = scmp.eq.s32.totalorder %s33, 0
      %s36 = sadd.s32 %s35, 1
      %s37 = scalar_select %p34, %s35, %s36
      %p40 = pneg %p34
      %p41 = scmp.eq.s32.totalorder %s11, 3
      %p42 = por %p40, %p41
      %p43 = scmp.ne.s32.totalorder %s35, %s38
      %p44 = scmp.eq.s32.totalorder %s11, 0
      %p45 = por %p43, %p44
      %p46 = scmp.ne.s32.totalorder %s35, %s38
      %p47 = scmp.eq.s32.totalorder %s16, 3
      %p48 = por %p46, %p47
      %p49 = scmp.ne.s32.totalorder %s38, %s39
      %p50 = scmp.eq.s32.totalorder %s16, 0
      %p51 = por %p49, %p50
      %p52 = scmp.ne.s32.totalorder %s38, %s39
      %p53 = scmp.eq.s32.totalorder %s17, 3
      %p54 = por %p52, %p53
      %p56 = scmp.ne.s32.totalorder %s39, %s55
      %p57 = scmp.eq.s32.totalorder %s17, 0
      %p58 = por %p56, %p57
      %s59 = ssub.s32 %s18, %s30
      %p60 = scmp.eq.s32.totalorder %s59, 0
      %s62 = sadd.s32 %s61, 1
      %s63 = scalar_select %p60, %s61, %s62
      %p66 = pneg %p60
      %p67 = scmp.eq.s32.totalorder %s11, 3
      %p68 = por %p66, %p67
      %p69 = scmp.ne.s32.totalorder %s61, %s64
      %p70 = scmp.eq.s32.totalorder %s11, 0
      %p71 = por %p69, %p70
      %p72 = scmp.ne.s32.totalorder %s61, %s64
      %p73 = scmp.eq.s32.totalorder %s16, 3
      %p74 = por %p72, %p73
      %p75 = scmp.ne.s32.totalorder %s64, %s65
      %p76 = scmp.eq.s32.totalorder %s16, 0
      %p77 = por %p75, %p76
      %p78 = scmp.ne.s32.totalorder %s64, %s65
      %p79 = scmp.eq.s32.totalorder %s17, 3
      %p80 = por %p78, %p79
      %p82 = scmp.ne.s32.totalorder %s65, %s81
      %p83 = scmp.eq.s32.totalorder %s17, 0
      %p84 = por %p82, %p83
      %s85 = ssub.s32 %s18, %s30
      %p86 = scmp.eq.s32.totalorder %s85, 0
      %s88 = sadd.s32 %s87, 1
      %s89 = scalar_select %p86, %s87, %s88
      %p92 = pneg %p86
      %p93 = scmp.eq.s32.totalorder %s11, 3
      %p94 = por %p92, %p93
      %p95 = scmp.ne.s32.totalorder %s87, %s90
      %p96 = scmp.eq.s32.totalorder %s11, 0
      %p97 = por %p95, %p96
      %p98 = scmp.ne.s32.totalorder %s87, %s90
      %p99 = scmp.eq.s32.totalorder %s16, 3
      %p100 = por %p98, %p99
      %p101 = scmp.ne.s32.totalorder %s90, %s91
      %p102 = scmp.eq.s32.totalorder %s16, 0
      %p103 = por %p101, %p102
      %p104 = scmp.ne.s32.totalorder %s90, %s91
      %p105 = scmp.eq.s32.totalorder %s17, 3
      %p106 = por %p104, %p105
      %p108 = scmp.ne.s32.totalorder %s91, %s107
      %p109 = scmp.eq.s32.totalorder %s17, 0
      %p110 = por %p108, %p109
      %p111 = scmp.le.s32.totalorder 1, %s11
      %p112 = scmp.lt.s32.totalorder %s11, 5
      %p113 = pnand %p111, %p112
      %p114 = pneg %p113
      // Predicated region
      $region9: #{tpu_custom_call.1} parent=5 // pred_check
        _
      $region10: #{tpu_custom_call.1} parent=5 // pred_check_branch
        %116 = sbr.rel (%p113) target = $region12
      $region11: #{tpu_custom_call.1} parent=5 // pred_region
        %s117 = ssub.s32 %s11, 1
      $region12: #{tpu_custom_call.1} parent=5 // pred_fallthru
        _
      %p118 = scmp.lt.s32.totalorder %s11, 4
      // Predicated region
      $region13: #{tpu_custom_call.1} parent=5 // pred_check
        %p119 = pneg %p118
      $region14: #{tpu_custom_call.1} parent=5 // pred_check_branch
        %121 = sbr.rel (%p119) target = $region16
      $region15: #{tpu_custom_call.1} parent=5 // pred_region
        // Predicated region
        $region17: #{tpu_custom_call.1} parent=15 // pred_check
          %p122 = pneg %p45
        $region18: #{tpu_custom_call.1} parent=15 // pred_check_branch
          %124 = sbr.rel (%p122) target = $region20
        $region19: #{tpu_custom_call.1} parent=15 // pred_region
          %s125 = sand.u32 %s35, 1
          %s126 = scalar_lea.sflag [#allocation4], %s125
          %s127 = sand.u32 %s35, 1
          %s128 = smul.addr %s127, 8
          %s129 = scalar_lea.vmem [#allocation3], %s128
          %s131 = ssub.s32 128, 128
          %132 = vsyncadd %s126, %s131
          %s133 = smul.addr %s18, 2
          %s134 = sadd.s32 %s19, %s133
          %s135 = smul.addr %s134, 128
          %s136 = scalar_lea.hbm %s0, %s135
          %s138 = sshll.u32 %s129, 4
          %s139 = int_to_ptr.vmem [resolvable:$true] %s138
          %141 = dma.hbm_to_vmem [thread:$0]  %s136, 128, %s139, %s126
        $region20: #{tpu_custom_call.1} parent=15 // pred_fallthru
          _
        // Predicated region
        $region21: #{tpu_custom_call.1} parent=15 // pred_check
          %p142 = pneg %p71
        $region22: #{tpu_custom_call.1} parent=15 // pred_check_branch
          %144 = sbr.rel (%p142) target = $region24
        $region23: #{tpu_custom_call.1} parent=15 // pred_region
          %p145 = scmp.lt.s32.totalorder %s18, 1
          %s146 = scalar_select %p145, %s18, 1
          %s147 = smul.addr %s146, 8
          %s148 = scalar_lea.vmem %s1, %s147
        $region24: #{tpu_custom_call.1} parent=15 // pred_fallthru
          _
      $region16: #{tpu_custom_call.1} parent=5 // pred_fallthru
        _
      %p149 = scmp.le.s32.totalorder 1, %s11
      %p150 = scmp.lt.s32.totalorder %s11, 5
      %p151 = pnand %p149, %p150
      %p152 = pneg %p151
      // Predicated region
      $region25: #{tpu_custom_call.1} parent=5 // pred_check
        _
      $region26: #{tpu_custom_call.1} parent=5 // pred_check_branch
        %154 = sbr.rel (%p151) target = $region28
      $region27: #{tpu_custom_call.1} parent=5 // pred_region
        %s155 = ssub.s32 %s11, 1
        %s156 = sand.u32 %s38, 1
        %s157 = scalar_lea.sflag [#allocation4], %s156
        %s158 = sand.u32 %s38, 1
        %s159 = smul.addr %s158, 8
        %s160 = scalar_lea.vmem [#allocation3], %s159
        // Predicated region
        $region29: #{tpu_custom_call.1} parent=27 // pred_check
          %p161 = pneg %p51
        $region30: #{tpu_custom_call.1} parent=27 // pred_check_branch
          %163 = sbr.rel (%p161) target = $region32
        $region31: #{tpu_custom_call.1} parent=27 // pred_region
          %164 = dma.done %s157, 128
        $region32: #{tpu_custom_call.1} parent=27 // pred_fallthru
          _
        %s165 = sand.u32 %s38, 1
        %s166 = scalar_lea.sflag [#allocation4], %s165
        %s167 = sand.u32 %s38, 1
        %s168 = smul.addr %s167, 8
        %s169 = scalar_lea.vmem [#allocation3], %s168
        %p170 = pneg %p51
        %p171 = pneg %p48
        %p172 = scmp.lt.s32.totalorder %s20, 1
        %s173 = scalar_select %p172, %s20, 1
        %s174 = smul.addr %s173, 8
        %s175 = scalar_lea.vmem %s1, %s174
        %p176 = pneg %p77
        %p177 = pneg %p74
        %p178 = pneg %p103
        %p179 = pneg %p100
        %p180 = scmp.lt.s32.totalorder %s20, 1
        %s181 = scalar_select %p180, %s20, 1
        %s182 = smul.addr %s181, 8
        %s183 = scalar_lea.vmem %s2, %s182
        %p184 = scmp.lt.s32.totalorder %s20, 1
        %s185 = scalar_select %p184, %s20, 1
        %s186 = smul.addr %s185, 8
        %s187 = scalar_lea.vmem %s1, %s186
        %p188 = scmp.lt.s32.totalorder %s20, 1
        %s189 = scalar_select %p188, %s20, 1
        %s190 = smul.addr %s189, 8
        %s191 = scalar_lea.vmem %s2, %s190
        %p192 = scmp.eq.s32.totalorder %s21, 0
        // Predicated region
        $region33: #{tpu_custom_call.1} parent=27 // pred_check
          %p193 = pneg %p192
        $region34: #{tpu_custom_call.1} parent=27 // pred_check_branch
          %195 = sbr.rel (%p193) target = $region36
        $region35: #{tpu_custom_call.1} parent=27 // pred_region
          %196 = vst [vmem:[#allocation2] sm:$0xff] 0.0
        $region36: #{tpu_custom_call.1} parent=27 // pred_fallthru
          _
        %v197 = vlaneseq
        %v198 = vshrl.u32 %v197, 7
        %s199 = smul.u32 %s20, 8
        %v200 = vstv %s199
        %v201 = vadd.s32 %v198, %v200
        %vm202 = vcmp.lt.s32.totalorder %v201, 13
        %v203 = vld [vmem:[%s187] sm:$0xff]
        %v204 = vsel %vm202, %v203, 4294967295
        %v205 = vlaneseq
        %v206 = vand.u32 %v205, 127
        %s207 = smul.u32 %s21, 128
        %v208 = vld [vmem:[%s160] sm:$0xff]
        %v209 = vstv %s207
        %v210 = vadd.s32 %v206, %v209
        %211 = vset.pattern.permute.xlu0 0
        %212 = vperm.xlu0 %211, %v204
        %v213 = vpop.permute.xlu0 %212
        %vm214 = vcmp.eq.s32.totalorder %v210, %v213
        %v215 = vsel %vm214, %v208, 0.0
        %v216 = vld [vmem:[#allocation2] sm:$0xff]
        %v217 = vadd.f32 %v216, %v215
        %218 = vst [vmem:[#allocation2] sm:$0xff] %v217
        %p219 = scmp.eq.s32.totalorder %s21, 1
        // Predicated region
        $region37: #{tpu_custom_call.1} parent=27 // pred_check
          %p220 = pneg %p219
        $region38: #{tpu_custom_call.1} parent=27 // pred_check_branch
          %222 = sbr.rel (%p220) target = $region40
        $region39: #{tpu_custom_call.1} parent=27 // pred_region
          %v223 = vld [vmem:[#allocation2] sm:$0xff]
          %224 = vadd.xlane.f32.xlu0 %v223
          %v225 = vpop.xlane.xlu0 %224
          %vm226 = vcmask 7168
          %227 = vst.msk [vmem:[%s191] sm:$0xff] %vm226, %v225
        $region40: #{tpu_custom_call.1} parent=27 // pred_fallthru
          _
        %p228 = scmp.lt.s32.totalorder %s20, 1
        %s229 = scalar_select %p228, %s20, 1
        %s230 = smul.addr %s229, 8
        %s231 = scalar_lea.vmem %s2, %s230
        // Predicated region
        $region41: #{tpu_custom_call.1} parent=27 // pred_check
          %p232 = pneg %p100
        $region42: #{tpu_custom_call.1} parent=27 // pred_check_branch
          %234 = sbr.rel (%p232) target = $region44
        $region43: #{tpu_custom_call.1} parent=27 // pred_region
          _
        $region44: #{tpu_custom_call.1} parent=27 // pred_fallthru
          _
      $region28: #{tpu_custom_call.1} parent=5 // pred_fallthru
        _
      %p235 = scmp.le.s32.totalorder 2, %s11
      // Predicated region
      $region45: #{tpu_custom_call.1} parent=5 // pred_check
        %p236 = pneg %p235
      $region46: #{tpu_custom_call.1} parent=5 // pred_check_branch
        %238 = sbr.rel (%p236) target = $region48
      $region47: #{tpu_custom_call.1} parent=5 // pred_region
        %s239 = ssub.s32 %s11, 2
        // Predicated region
        $region49: #{tpu_custom_call.1} parent=47 // pred_check
          %p240 = pneg %p106
        $region50: #{tpu_custom_call.1} parent=47 // pred_check_branch
          %242 = sbr.rel (%p240) target = $region52
        $region51: #{tpu_custom_call.1} parent=47 // pred_region
          %p243 = scmp.lt.s32.totalorder %s22, 1
          %s244 = scalar_select %p243, %s22, 1
          %s245 = smul.addr %s244, 8
          %s246 = scalar_lea.vmem %s2, %s245
        $region52: #{tpu_custom_call.1} parent=47 // pred_fallthru
          _
      $region48: #{tpu_custom_call.1} parent=5 // pred_fallthru
        _
    $region6: #{tpu_custom_call.1} parent=1 // loop_footer
      %s15 = sadd.s32 1, %s11
    $region7: #{tpu_custom_call.1} parent=1 // loop_footer_branch
      %10 = sbr.rel target = $region3
    $region8: #{tpu_custom_call.1} parent=1 // loop_exit
      _
    %247 = vsyncpa [#allocation4], 1
    %s248 = scalar_lea.sflag [#allocation4], 1
    %249 = vsyncpa %s248, 1

</llo_original>
